<compile_context>
chip_gen: v5e
topology: v5e:2x2
jax: 0.10.0
libtpu: 0.0.40
codegen_flags: <defaults>
</compile_context>

<pallas_src>
import functools

import jax
import jax.numpy as jnp
from jax.experimental import pallas as pl
from jax.experimental.pallas import tpu as pltpu


def qnet_kernel(x_ref, w1_ref, b1_ref, w2_ref, b2_ref, w3_ref, b3_ref, o_ref):
    # Layer 1: Linear + Tanh. X arrives in its storage dtype (f32) and is cast to
    # the weight/compute dtype here (avoids a separate wrapper-side cast pass).
    x = x_ref[...].astype(w1_ref.dtype)
    h1 = jnp.dot(x, w1_ref[...], preferred_element_type=jnp.float32)
    h1 = jnp.tanh(h1 + b1_ref[...])
    # Layer 2: Linear + ReLU (MXU in compute dtype, f32 accumulation).
    h2 = jnp.dot(h1.astype(w2_ref.dtype), w2_ref[...],
                 preferred_element_type=jnp.float32)
    h2 = jnp.maximum(h2 + b2_ref[...], 0.0)
    # Layer 3: Linear. MXU runs on the 128-wide padded W3; only the real d_out
    # columns are stored (block last dim == full output array dim).
    y = jnp.dot(h2.astype(w3_ref.dtype), w3_ref[...],
                preferred_element_type=jnp.float32)
    y = y + b3_ref[...]
    o_ref[...] = y[:, : o_ref.shape[-1]].astype(o_ref.dtype)


def _round_up(n, m):
    return ((n + m - 1) // m) * m


def prepare_qnet_params(w1, b1, w2, b2, w3, b3, compute_dtype=jnp.bfloat16):
    """One-time parameter prep (done at init / param-update, NOT per forward):
    zero-pad hidden dim to 128 and output dim to 128 (tanh(0)=0, relu(0)=0, zero
    rows/cols => padded lanes stay exactly 0), cast weights to the MXU compute
    dtype, keep biases in f32."""
    d_in, d_h = w1.shape
    d_out = w3.shape[1]
    H = _round_up(max(d_h, 128), 128)
    O = _round_up(max(d_out, 128), 128)
    cdt = jnp.dtype(compute_dtype)

    w1p = jnp.pad(w1, ((0, 0), (0, H - d_h))).astype(cdt)
    b1p = jnp.pad(b1, ((0, 0), (0, H - d_h))).astype(jnp.float32)
    w2p = jnp.pad(w2, ((0, H - d_h), (0, H - d_h))).astype(cdt)
    b2p = jnp.pad(b2, ((0, 0), (0, H - d_h))).astype(jnp.float32)
    w3p = jnp.pad(w3, ((0, H - d_h), (0, O - d_out))).astype(cdt)
    b3p = jnp.pad(b3, ((0, 0), (0, O - d_out))).astype(jnp.float32)
    return w1p, b1p, w2p, b2p, w3p, b3p


@functools.partial(jax.jit, static_argnames=("d_out", "block_b"))
def qnet_forward(x, w1p, b1p, w2p, b2p, w3p, b3p, *, d_out=4, block_b=4096):
    B, d_in = x.shape
    H = w1p.shape[1]
    O = w3p.shape[1]
    cdt = w1p.dtype

    # Batch tiling: one big tile if the batch fits (single grid step amortizes the
    # ~0.35us per-step overhead); otherwise 8-row-aligned tiles of up to block_b.
    # block_b=4096 keeps per-tile VMEM (X/out double buffers + three f32 (bb,128)
    # intermediates, ~15-20 MiB) under the 32 MiB scoped default on v5e/v6e/v7x.
    if B <= 8:
        Bp, bb = B, B          # block == full array dims -> (8,128) rule satisfied
        xp = x
    else:
        Bp = _round_up(B, 8)
        xp = x if Bp == B else jnp.pad(x, ((0, Bp - B), (0, 0)))
        bb = min(_round_up(block_b, 8), Bp)

    grid = (pl.cdiv(Bp, bb),)

    cost = pl.CostEstimate(
        flops=2 * B * (d_in * H + H * H + H * O),
        transcendentals=B * H,
        bytes_accessed=(B * d_in * x.dtype.itemsize
                        + (d_in * H + H * H + H * O) * cdt.itemsize
                        + 3 * H * 4
                        + B * d_out * 4),
    )

    y = pl.pallas_call(
        qnet_kernel,
        out_shape=jax.ShapeDtypeStruct((Bp, d_out), jnp.float32),
        grid_spec=pl.GridSpec(
            grid=grid,
            in_specs=[
                pl.BlockSpec((bb, d_in), lambda i: (i, 0)),  # X tile (pipelined)
                pl.BlockSpec((d_in, H), lambda i: (0, 0)),   # W1 (resident)
                pl.BlockSpec((1, H), lambda i: (0, 0)),      # b1
                pl.BlockSpec((H, H), lambda i: (0, 0)),      # W2 (resident)
                pl.BlockSpec((1, H), lambda i: (0, 0)),      # b2
                pl.BlockSpec((H, O), lambda i: (0, 0)),      # W3 (resident)
                pl.BlockSpec((1, O), lambda i: (0, 0)),      # b3
            ],
            # (bb, d_out): last dim equals the full array dim, writeback is the
            # real 4 columns only.
            out_specs=pl.BlockSpec((bb, d_out), lambda i: (i, 0)),
        ),
        compiler_params=pltpu.CompilerParams(
            dimension_semantics=("parallel",),
        ),
        cost_estimate=cost,
    )(xp, w1p, b1p, w2p, b2p, w3p, b3p)

    return y if Bp == B else y[:B]


def init_qnet_params(key, input_size=12, output_size=4, hidden_size=100,
                     dtype=jnp.float32):
    """Deterministic init mimicking PyTorch Linear defaults (U(+-1/sqrt(fan_in))).
    Weights are stored [in, out] (transposed relative to PyTorch)."""
    ks = jax.random.split(key, 6)

    def layer(kw, kb, fan_in, fan_out):
        bound = 1.0 / jnp.sqrt(jnp.asarray(fan_in, dtype=jnp.float32))
        w = jax.random.uniform(kw, (fan_in, fan_out), dtype, -bound, bound)
        b = jax.random.uniform(kb, (1, fan_out), dtype, -bound, bound)
        return w, b

    w1, b1 = layer(ks[0], ks[1], input_size, hidden_size)
    w2, b2 = layer(ks[2], ks[3], hidden_size, hidden_size)
    w3, b3 = layer(ks[4], ks[5], hidden_size, output_size)
    return w1, b1, w2, b2, w3, b3


def qnet_reference(x, w1, b1, w2, b2, w3, b3, compute_dtype=jnp.float32):
    """Pure-JAX reference with the same operand-dtype handling as the kernel."""
    cdt = jnp.dtype(compute_dtype)
    xc = x.astype(cdt)
    h1 = jnp.tanh(jnp.dot(xc, w1.astype(cdt),
                          preferred_element_type=jnp.float32) + b1)
    h2 = jnp.maximum(jnp.dot(h1.astype(cdt), w2.astype(cdt),
                             preferred_element_type=jnp.float32) + b2, 0.0)
    return jnp.dot(h2.astype(cdt), w3.astype(cdt),
                   preferred_element_type=jnp.float32) + b3


if __name__ == "__main__":
    key = jax.random.PRNGKey(0)
    k_params, k_x = jax.random.split(key)

    input_size, output_size, hidden_size = 12, 4, 100
    batch = 64

    raw_params = init_qnet_params(k_params, input_size, output_size, hidden_size)
    x = jax.random.normal(k_x, (batch, input_size), dtype=jnp.float32)

    # f32 operand path: tight comparison against the pure-JAX reference.
    p_f32 = prepare_qnet_params(*raw_params, compute_dtype=jnp.float32)
    y_f32 = jax.block_until_ready(qnet_forward(x, *p_f32, d_out=output_size))
    ref_f32 = qnet_reference(x, *raw_params, compute_dtype=jnp.float32)
    assert y_f32.shape == (batch, output_size)
    assert jnp.allclose(y_f32, ref_f32, atol=1e-4, rtol=1e-4), "f32 mismatch"

    # Default bf16-operand path (f32 accumulation via preferred_element_type).
    p_bf16 = prepare_qnet_params(*raw_params)
    y_bf16 = jax.block_until_ready(qnet_forward(x, *p_bf16, d_out=output_size))
    ref_bf16 = qnet_reference(x, *raw_params, compute_dtype=jnp.bfloat16)
    assert y_bf16.shape == (batch, output_size)
    assert jnp.allclose(y_bf16, ref_bf16, atol=2e-3, rtol=2e-3), "bf16 mismatch"

    # Non-multiple-of-8 batch (exercises the wrapper row-pad + result slice path).
    x_odd = x[:10]
    y_odd = jax.block_until_ready(qnet_forward(x_odd, *p_f32, d_out=output_size))
    ref_odd = qnet_reference(x_odd, *raw_params, compute_dtype=jnp.float32)
    assert y_odd.shape == (10, output_size)
    assert jnp.allclose(y_odd, ref_odd, atol=1e-4, rtol=1e-4), "odd-batch mismatch"

    print("KERNEL_OK")
</pallas_src>

<mosaic_0001>
module attributes {stable_mosaic.version = 11 : i64} {
  func.func @qnet_kernel(%arg0: i32, %arg1: memref<64x12xf32, #tpu.memory_space<vmem>>, %arg2: memref<12x128xf32, #tpu.memory_space<vmem>>, %arg3: memref<1x128xf32, #tpu.memory_space<vmem>>, %arg4: memref<128x128xf32, #tpu.memory_space<vmem>>, %arg5: memref<1x128xf32, #tpu.memory_space<vmem>>, %arg6: memref<128x128xf32, #tpu.memory_space<vmem>>, %arg7: memref<1x128xf32, #tpu.memory_space<vmem>>, %arg8: memref<64x4xf32, #tpu.memory_space<vmem>>) attributes {dimension_semantics = [#tpu.dimension_semantics<parallel>], iteration_bounds = array<i64: 1>, scalar_prefetch = 0 : i64, scratch_operands = 0 : i64, tpu.core_type = #tpu.core_type<tc>, window_params = [{transform_indices = @transform_0, window_bounds = array<i64: 64, 12>}, {pipeline_mode = #tpu.pipeline_mode<synchronous>, transform_indices = @transform_1, window_bounds = array<i64: 12, 128>}, {pipeline_mode = #tpu.pipeline_mode<synchronous>, transform_indices = @transform_2, window_bounds = array<i64: 1, 128>}, {pipeline_mode = #tpu.pipeline_mode<synchronous>, transform_indices = @transform_3, window_bounds = array<i64: 128, 128>}, {pipeline_mode = #tpu.pipeline_mode<synchronous>, transform_indices = @transform_4, window_bounds = array<i64: 1, 128>}, {pipeline_mode = #tpu.pipeline_mode<synchronous>, transform_indices = @transform_5, window_bounds = array<i64: 128, 128>}, {pipeline_mode = #tpu.pipeline_mode<synchronous>, transform_indices = @transform_6, window_bounds = array<i64: 1, 128>}, {transform_indices = @transform_7, window_bounds = array<i64: 64, 4>}]} {
    %c0 = arith.constant 0 : index
    %c0_0 = arith.constant 0 : index
    %0 = vector.load %arg1[%c0, %c0_0] : memref<64x12xf32, #tpu.memory_space<vmem>>, vector<64x12xf32>
    %c0_1 = arith.constant 0 : index
    %c0_2 = arith.constant 0 : index
    %1 = vector.load %arg2[%c0_1, %c0_2] : memref<12x128xf32, #tpu.memory_space<vmem>>, vector<12x128xf32>
    %cst = arith.constant dense<0.000000e+00> : vector<64x128xf32>
    %2 = tpu.matmul %0, %1, %cst {dimension_numbers = #tpu.dot_dimension_numbers<[1], [0], [0], [1], [0, 0, 1, 1], [], []>} : vector<64x12xf32>, vector<12x128xf32>, vector<64x128xf32> -> vector<64x128xf32>
    %c0_3 = arith.constant 0 : index
    %c0_4 = arith.constant 0 : index
    %3 = vector.load %arg3[%c0_3, %c0_4] : memref<1x128xf32, #tpu.memory_space<vmem>>, vector<1x128xf32>
    %4 = vector.broadcast %3 : vector<1x128xf32> to vector<64x128xf32>
    %5 = arith.addf %2, %4 : vector<64x128xf32>
    %6 = math.tanh %5 : vector<64x128xf32>
    %c0_5 = arith.constant 0 : index
    %c0_6 = arith.constant 0 : index
    %7 = vector.load %arg4[%c0_5, %c0_6] : memref<128x128xf32, #tpu.memory_space<vmem>>, vector<128x128xf32>
    %cst_7 = arith.constant dense<0.000000e+00> : vector<64x128xf32>
    %8 = tpu.matmul %6, %7, %cst_7 {dimension_numbers = #tpu.dot_dimension_numbers<[1], [0], [0], [1], [0, 0, 1, 1], [], []>} : vector<64x128xf32>, vector<128x128xf32>, vector<64x128xf32> -> vector<64x128xf32>
    %c0_8 = arith.constant 0 : index
    %c0_9 = arith.constant 0 : index
    %9 = vector.load %arg5[%c0_8, %c0_9] : memref<1x128xf32, #tpu.memory_space<vmem>>, vector<1x128xf32>
    %10 = vector.broadcast %9 : vector<1x128xf32> to vector<64x128xf32>
    %11 = arith.addf %8, %10 : vector<64x128xf32>
    %cst_10 = arith.constant 0.000000e+00 : f32
    %12 = vector.broadcast %cst_10 : f32 to vector<64x128xf32>
    %13 = arith.maximumf %11, %12 : vector<64x128xf32>
    %c0_11 = arith.constant 0 : index
    %c0_12 = arith.constant 0 : index
    %14 = vector.load %arg6[%c0_11, %c0_12] : memref<128x128xf32, #tpu.memory_space<vmem>>, vector<128x128xf32>
    %cst_13 = arith.constant dense<0.000000e+00> : vector<64x128xf32>
    %15 = tpu.matmul %13, %14, %cst_13 {dimension_numbers = #tpu.dot_dimension_numbers<[1], [0], [0], [1], [0, 0, 1, 1], [], []>} : vector<64x128xf32>, vector<128x128xf32>, vector<64x128xf32> -> vector<64x128xf32>
    %c0_14 = arith.constant 0 : index
    %c0_15 = arith.constant 0 : index
    %16 = vector.load %arg7[%c0_14, %c0_15] : memref<1x128xf32, #tpu.memory_space<vmem>>, vector<1x128xf32>
    %17 = vector.broadcast %16 : vector<1x128xf32> to vector<64x128xf32>
    %18 = arith.addf %15, %17 : vector<64x128xf32>
    %19 = vector.extract_strided_slice %18 {offsets = [0, 0], sizes = [64, 4], strides = [1, 1]} : vector<64x128xf32> to vector<64x4xf32>
    %c0_16 = arith.constant 0 : index
    %c0_17 = arith.constant 0 : index
    %20 = vector.load %arg8[%c0_16, %c0_17] : memref<64x4xf32, #tpu.memory_space<vmem>>, vector<64x4xf32>
    tpu.vector_store %arg8[%c0_16, %c0_17], %19 {strides = array<i32>} : memref<64x4xf32, #tpu.memory_space<vmem>>, vector<64x4xf32>,
    return
  }
  func.func @transform_0(%arg0: i32) -> (i32, i32) {
    %c0_i32 = arith.constant 0 : i32
    %c0_i32_0 = arith.constant 0 : i32
    return %arg0, %c0_i32 : i32, i32
  }
  func.func @transform_1(%arg0: i32) -> (i32, i32) {
    %c0_i32 = arith.constant 0 : i32
    %c0_i32_0 = arith.constant 0 : i32
    %c0_i32_1 = arith.constant 0 : i32
    return %c0_i32, %c0_i32_0 : i32, i32
  }
  func.func @transform_2(%arg0: i32) -> (i32, i32) {
    %c0_i32 = arith.constant 0 : i32
    %c0_i32_0 = arith.constant 0 : i32
    %c0_i32_1 = arith.constant 0 : i32
    return %c0_i32, %c0_i32_0 : i32, i32
  }
  func.func @transform_3(%arg0: i32) -> (i32, i32) {
    %c0_i32 = arith.constant 0 : i32
    %c0_i32_0 = arith.constant 0 : i32
    %c0_i32_1 = arith.constant 0 : i32
    return %c0_i32, %c0_i32_0 : i32, i32
  }
  func.func @transform_4(%arg0: i32) -> (i32, i32) {
    %c0_i32 = arith.constant 0 : i32
    %c0_i32_0 = arith.constant 0 : i32
    %c0_i32_1 = arith.constant 0 : i32
    return %c0_i32, %c0_i32_0 : i32, i32
  }
  func.func @transform_5(%arg0: i32) -> (i32, i32) {
    %c0_i32 = arith.constant 0 : i32
    %c0_i32_0 = arith.constant 0 : i32
    %c0_i32_1 = arith.constant 0 : i32
    return %c0_i32, %c0_i32_0 : i32, i32
  }
  func.func @transform_6(%arg0: i32) -> (i32, i32) {
    %c0_i32 = arith.constant 0 : i32
    %c0_i32_0 = arith.constant 0 : i32
    %c0_i32_1 = arith.constant 0 : i32
    return %c0_i32, %c0_i32_0 : i32, i32
  }
  func.func @transform_7(%arg0: i32) -> (i32, i32) {
    %c0_i32 = arith.constant 0 : i32
    %c0_i32_0 = arith.constant 0 : i32
    return %arg0, %c0_i32 : i32, i32
  }
}

</mosaic_0001>

<llo_original>
// kernel: qnet_forward.1
$region0: #{qnet_forward.1}
  #allocation0 [shape = 'u32[]', space=smem, size = 0x4, offset = 0x4, fixed_abs, tag = 'smem constant byte address 0x4 - core index']
  #allocation1 [shape = 'u32[72,128]{1,0:T(1,128)}', space=vmem, size = 0x9000, scoped, tag = 'internal scratch']
  %s0 = inlined_call_operand.vmem [shape: f32[64,12], index: 0, kind: input, shape index: {}]
  %s1 = inlined_call_operand.vmem [shape: f32[12,128], index: 1, kind: input, shape index: {}]
  %s2 = inlined_call_operand.vmem [shape: f32[1,128], index: 2, kind: input, shape index: {}]
  %s3 = inlined_call_operand.hbm [shape: f32[128,128], index: 3, kind: input, shape index: {}]
  %s4 = inlined_call_operand.vmem [shape: f32[1,128], index: 4, kind: input, shape index: {}]
  %s5 = inlined_call_operand.hbm [shape: f32[128,128], index: 5, kind: input, shape index: {}]
  %s6 = inlined_call_operand.vmem [shape: f32[1,128], index: 6, kind: input, shape index: {}]
  %s7 = inlined_call_operand.vmem [shape: f32[64,4], index: 7, kind: output, shape index: {}]
  %s8 = sld [smem:[#allocation0]]
  $region46: #{qnet_forward.1} parent=0
    _
  %s10 = ssub.s32 1, %s8
  %s11 = scalar_select 0, %s10, %s8
  $region1: #{qnet_forward.1} parent=0
    #allocation2 [shape = 'u8[65536]{0}', space=vmem, size = 0x10000, scoped, tag = 'input window, operand 3, single buffered']
    #allocation3 [shape = 's32[1]{0}', space=sflag, size = 0x4, scoped, tag = 'scoped memory for qnet_forward.1']
    #allocation4 [shape = 'u8[65536]{0}', space=vmem, size = 0x10000, scoped, tag = 'input window, operand 5, single buffered']
    #allocation5 [shape = 's32[1]{0}', space=sflag, size = 0x4, scoped, tag = 'scoped memory for qnet_forward.1']
    %12 = vsyncpa [#allocation3], 0
    %13 = vsyncpa [#allocation5], 0
    // Predicated region
    $region2: #{qnet_forward.1} parent=1 // pred_check
      _
    $region3: #{qnet_forward.1} parent=1 // pred_check_branch
      %15 = sbr.rel (0) target = $region5
    $region4: #{qnet_forward.1} parent=1 // pred_region
      _
    $region5: #{qnet_forward.1} parent=1 // pred_fallthru
      _
    // Predicated region
    $region6: #{qnet_forward.1} parent=1 // pred_check
      _
    $region7: #{qnet_forward.1} parent=1 // pred_check_branch
      %17 = sbr.rel (0) target = $region9
    $region8: #{qnet_forward.1} parent=1 // pred_region
      _
    $region9: #{qnet_forward.1} parent=1 // pred_fallthru
      _
    // Predicated region
    $region10: #{qnet_forward.1} parent=1 // pred_check
      _
    $region11: #{qnet_forward.1} parent=1 // pred_check_branch
      %19 = sbr.rel (0) target = $region13
    $region12: #{qnet_forward.1} parent=1 // pred_region
      _
    $region13: #{qnet_forward.1} parent=1 // pred_fallthru
      _
    // Predicated region
    $region14: #{qnet_forward.1} parent=1 // pred_check
      _
    $region15: #{qnet_forward.1} parent=1 // pred_check_branch
      %21 = sbr.rel (0) target = $region17
    $region16: #{qnet_forward.1} parent=1 // pred_region
      %23 = vsyncadd [#allocation3], 0
      %s24 = sshll.u32 %s3, 4
      %s25 = int_to_ptr.hbm [resolvable:$true] %s24
      %s26 = sshll.u32 [#allocation2], 4
      %s27 = int_to_ptr.vmem [resolvable:$true] %s26
      %32 = dma.hbm_to_vmem [thread:$0]  %s25, 2048, %s27, [#allocation3], 128, 128, 8
    $region17: #{qnet_forward.1} parent=1 // pred_fallthru
      _
    // Predicated region
    $region18: #{qnet_forward.1} parent=1 // pred_check
      _
    $region19: #{qnet_forward.1} parent=1 // pred_check_branch
      %34 = sbr.rel (0) target = $region21
    $region20: #{qnet_forward.1} parent=1 // pred_region
      _
    $region21: #{qnet_forward.1} parent=1 // pred_fallthru
      _
    // Predicated region
    $region22: #{qnet_forward.1} parent=1 // pred_check
      _
    $region23: #{qnet_forward.1} parent=1 // pred_check_branch
      %36 = sbr.rel (0) target = $region25
    $region24: #{qnet_forward.1} parent=1 // pred_region
      %38 = vsyncadd [#allocation5], 0
      %s39 = sshll.u32 %s5, 4
      %s40 = int_to_ptr.hbm [resolvable:$true] %s39
      %s41 = sshll.u32 [#allocation4], 4
      %s42 = int_to_ptr.vmem [resolvable:$true] %s41
      %47 = dma.hbm_to_vmem [thread:$0]  %s40, 2048, %s42, [#allocation5], 128, 128, 8
    $region25: #{qnet_forward.1} parent=1 // pred_fallthru
      _
    // Predicated region
    $region26: #{qnet_forward.1} parent=1 // pred_check
      _
    $region27: #{qnet_forward.1} parent=1 // pred_check_branch
      %49 = sbr.rel (0) target = $region29
    $region28: #{qnet_forward.1} parent=1 // pred_region
      _
    $region29: #{qnet_forward.1} parent=1 // pred_fallthru
      _
    // Predicated region
    $region30: #{qnet_forward.1} parent=1 // pred_check
      _
    $region31: #{qnet_forward.1} parent=1 // pred_check_branch
      %51 = sbr.rel (0) target = $region33
    $region32: #{qnet_forward.1} parent=1 // pred_region
      %53 = dma.done [#allocation3], 2048
    $region33: #{qnet_forward.1} parent=1 // pred_fallthru
      _
    // Predicated region
    $region34: #{qnet_forward.1} parent=1 // pred_check
      _
    $region35: #{qnet_forward.1} parent=1 // pred_check_branch
      %55 = sbr.rel (0) target = $region37
    $region36: #{qnet_forward.1} parent=1 // pred_region
      %57 = dma.done [#allocation5], 2048
    $region37: #{qnet_forward.1} parent=1 // pred_fallthru
      _
    %v58 = vld [vmem:[%s0] sm:$0xff]
    %v59 = vld [vmem:[%s0 + $0x8] sm:$0xff]
    %v60 = vld [vmem:[%s0 + $0x10] sm:$0xff]
    %v61 = vld [vmem:[%s0 + $0x18] sm:$0xff]
    %v62 = vld [vmem:[%s0 + $0x20] sm:$0xff]
    %v63 = vld [vmem:[%s0 + $0x28] sm:$0xff]
    %v64 = vld [vmem:[%s0 + $0x30] sm:$0xff]
    %v65 = vld [vmem:[%s0 + $0x38] sm:$0xff]
    %v66 = vld [vmem:[%s1] sm:$0xff]
    %v67 = vld [vmem:[%s1 + $0x8] sm:$0xf]
    %v68 = vld [vmem:[%s2] sm:$0x1]
    %v70 = vperm.slane %v68, 0
    %vm72 = vcmask 97280
    %v74 = vsel %vm72, %v58, 0
    %v77 = vsel %vm72, %v59, 0
    %v80 = vsel %vm72, %v60, 0
    %v83 = vsel %vm72, %v61, 0
    %v86 = vsel %vm72, %v62, 0
    %v89 = vsel %vm72, %v63, 0
    %v92 = vsel %vm72, %v64, 0
    %v95 = vsel %vm72, %v65, 0
    %vm97 = vcmask 1043456
    %v99 = vsel %vm97, %v67, 0
    %101 = vmatpush.msra.mxu0 0.0
    %102 = vmatpush.msra.mxu0 0.0
    %103 = vmatpush.msra.mxu0 0.0
    %104 = vmatpush.msra.mxu0 0.0
    %105 = vmatpush.msra.mxu0 0.0
    %106 = vmatpush.msra.mxu0 0.0
    %107 = vmatpush.msra.mxu0 0.0
    %108 = vmatpush.msra.mxu0 0.0
    %109 = vmatpush.msra.mxu0 0.0
    %110 = vmatpush.msra.mxu0 0.0
    %111 = vmatpush.msra.mxu0 0.0
    %112 = vmatpush.msra.mxu0 0.0
    %113 = vmatpush.msra.mxu0 0.0
    %114 = vmatpush.msra.mxu0 0.0
    %115 = vmatpush.msra.mxu0 %v99
    %116 = vmatpush.msra.mxu0 %v66
    %117 = vmatmul.f32.gmra.mxu0 %v74
    %v118 = vpop.f32.mrf.mxu0
    %v119 = vadd.f32 %v70, %v118
    %120 = vmatmul.f32.gmra.mxu0 %v77
    %v121 = vpop.f32.mrf.mxu0
    %v122 = vadd.f32 %v70, %v121
    %123 = vmatmul.f32.gmra.mxu0 %v80
    %v124 = vpop.f32.mrf.mxu0
    %v125 = vadd.f32 %v70, %v124
    %126 = vmatmul.f32.gmra.mxu0 %v83
    %v127 = vpop.f32.mrf.mxu0
    %v128 = vadd.f32 %v70, %v127
    %129 = vmatmul.f32.gmra.mxu0 %v86
    %v130 = vpop.f32.mrf.mxu0
    %v131 = vadd.f32 %v70, %v130
    %132 = vmatmul.f32.gmra.mxu0 %v89
    %v133 = vpop.f32.mrf.mxu0
    %v134 = vadd.f32 %v70, %v133
    %135 = vmatmul.f32.gmra.mxu0 %v92
    %v136 = vpop.f32.mrf.mxu0
    %v137 = vadd.f32 %v70, %v136
    %138 = vmatmul.f32.gmra.mxu0 %v95
    %v139 = vpop.f32.mrf.mxu0
    %v140 = vadd.f32 %v70, %v139
    %141 = vdwg.mxu0
    %v142 = vtanh.pop %v119
    %v143 = vtanh.pop %v122
    %v144 = vtanh.pop %v125
    %v145 = vtanh.pop %v128
    %v146 = vtanh.pop %v131
    %v147 = vtanh.pop %v134
    %v148 = vtanh.pop %v137
    %v149 = vtanh.pop %v140
    %v150 = vld [vmem:[#allocation2] sm:$0xff]
    %v151 = vld [vmem:[#allocation2 + $0x8] sm:$0xff]
    %v152 = vld [vmem:[#allocation2 + $0x10] sm:$0xff]
    %v153 = vld [vmem:[#allocation2 + $0x18] sm:$0xff]
    %v154 = vld [vmem:[#allocation2 + $0x20] sm:$0xff]
    %v155 = vld [vmem:[#allocation2 + $0x28] sm:$0xff]
    %v156 = vld [vmem:[#allocation2 + $0x30] sm:$0xff]
    %v157 = vld [vmem:[#allocation2 + $0x38] sm:$0xff]
    %v158 = vld [vmem:[#allocation2 + $0x40] sm:$0xff]
    %v159 = vld [vmem:[#allocation2 + $0x48] sm:$0xff]
    %v160 = vld [vmem:[#allocation2 + $0x50] sm:$0xff]
    %v161 = vld [vmem:[#allocation2 + $0x58] sm:$0xff]
    %v162 = vld [vmem:[#allocation2 + $0x60] sm:$0xff]
    %v163 = vld [vmem:[#allocation2 + $0x68] sm:$0xff]
    %v164 = vld [vmem:[#allocation2 + $0x70] sm:$0xff]
    %v165 = vld [vmem:[#allocation2 + $0x78] sm:$0xff]
    %v166 = vld [vmem:[%s4] sm:$0x1]
    %v168 = vperm.slane %v166, 0
    %170 = vmatpush.msra.mxu0 %v165
    %171 = vmatpush.msra.mxu0 %v164
    %172 = vmatpush.msra.mxu0 %v163
    %173 = vmatpush.msra.mxu0 %v162
    %174 = vmatpush.msra.mxu0 %v161
    %175 = vmatpush.msra.mxu0 %v160
    %176 = vmatpush.msra.mxu0 %v159
    %177 = vmatpush.msra.mxu0 %v158
    %178 = vmatpush.msra.mxu0 %v157
    %179 = vmatpush.msra.mxu0 %v156
    %180 = vmatpush.msra.mxu0 %v155
    %181 = vmatpush.msra.mxu0 %v154
    %182 = vmatpush.msra.mxu0 %v153
    %183 = vmatpush.msra.mxu0 %v152
    %184 = vmatpush.msra.mxu0 %v151
    %185 = vmatpush.msra.mxu0 %v150
    %186 = vmatmul.f32.gmra.mxu0 %v142
    %v187 = vpop.f32.mrf.mxu0
    %v188 = vadd.f32 %v168, %v187
    %189 = vmatmul.f32.gmra.mxu0 %v143
    %v190 = vpop.f32.mrf.mxu0
    %v191 = vadd.f32 %v168, %v190
    %192 = vmatmul.f32.gmra.mxu0 %v144
    %v193 = vpop.f32.mrf.mxu0
    %v194 = vadd.f32 %v168, %v193
    %195 = vmatmul.f32.gmra.mxu0 %v145
    %v196 = vpop.f32.mrf.mxu0
    %v197 = vadd.f32 %v168, %v196
    %198 = vmatmul.f32.gmra.mxu0 %v146
    %v199 = vpop.f32.mrf.mxu0
    %v200 = vadd.f32 %v168, %v199
    %201 = vmatmul.f32.gmra.mxu0 %v147
    %v202 = vpop.f32.mrf.mxu0
    %v203 = vadd.f32 %v168, %v202
    %204 = vmatmul.f32.gmra.mxu0 %v148
    %v205 = vpop.f32.mrf.mxu0
    %v206 = vadd.f32 %v168, %v205
    %207 = vmatmul.f32.gmra.mxu0 %v149
    %v208 = vpop.f32.mrf.mxu0
    %v209 = vadd.f32 %v168, %v208
    %210 = vdwg.mxu0
    %v211 = vmax.f32 %v188, 0.0
    %v212 = vmax.f32 %v191, 0.0
    %v213 = vmax.f32 %v194, 0.0
    %v214 = vmax.f32 %v197, 0.0
    %v215 = vmax.f32 %v200, 0.0
    %v216 = vmax.f32 %v203, 0.0
    %v217 = vmax.f32 %v206, 0.0
    %v218 = vmax.f32 %v209, 0.0
    %v219 = vld [vmem:[#allocation4] sm:$0xff]
    %v220 = vld [vmem:[#allocation4 + $0x8] sm:$0xff]
    %v221 = vld [vmem:[#allocation4 + $0x10] sm:$0xff]
    %v222 = vld [vmem:[#allocation4 + $0x18] sm:$0xff]
    %v223 = vld [vmem:[#allocation4 + $0x20] sm:$0xff]
    %v224 = vld [vmem:[#allocation4 + $0x28] sm:$0xff]
    %v225 = vld [vmem:[#allocation4 + $0x30] sm:$0xff]
    %v226 = vld [vmem:[#allocation4 + $0x38] sm:$0xff]
    %v227 = vld [vmem:[#allocation4 + $0x40] sm:$0xff]
    %v228 = vld [vmem:[#allocation4 + $0x48] sm:$0xff]
    %v229 = vld [vmem:[#allocation4 + $0x50] sm:$0xff]
    %v230 = vld [vmem:[#allocation4 + $0x58] sm:$0xff]
    %v231 = vld [vmem:[#allocation4 + $0x60] sm:$0xff]
    %v232 = vld [vmem:[#allocation4 + $0x68] sm:$0xff]
    %v233 = vld [vmem:[#allocation4 + $0x70] sm:$0xff]
    %v234 = vld [vmem:[#allocation4 + $0x78] sm:$0xff]
    %v235 = vld [vmem:[%s6] sm:$0x1]
    %v237 = vperm.slane %v235, 0
    %239 = vmatpush.msra.mxu0 %v234
    %240 = vmatpush.msra.mxu0 %v233
    %241 = vmatpush.msra.mxu0 %v232
    %242 = vmatpush.msra.mxu0 %v231
    %243 = vmatpush.msra.mxu0 %v230
    %244 = vmatpush.msra.mxu0 %v229
    %245 = vmatpush.msra.mxu0 %v228
    %246 = vmatpush.msra.mxu0 %v227
    %247 = vmatpush.msra.mxu0 %v226
    %248 = vmatpush.msra.mxu0 %v225
    %249 = vmatpush.msra.mxu0 %v224
    %250 = vmatpush.msra.mxu0 %v223
    %251 = vmatpush.msra.mxu0 %v222
    %252 = vmatpush.msra.mxu0 %v221
    %253 = vmatpush.msra.mxu0 %v220
    %254 = vmatpush.msra.mxu0 %v219
    %255 = vmatmul.f32.gmra.mxu0 %v211
    %v256 = vpop.f32.mrf.mxu0
    %v257 = vadd.f32 %v237, %v256
    %258 = vmatmul.f32.gmra.mxu0 %v212
    %v259 = vpop.f32.mrf.mxu0
    %v260 = vadd.f32 %v237, %v259
    %261 = vmatmul.f32.gmra.mxu0 %v213
    %v262 = vpop.f32.mrf.mxu0
    %v263 = vadd.f32 %v237, %v262
    %264 = vmatmul.f32.gmra.mxu0 %v214
    %v265 = vpop.f32.mrf.mxu0
    %v266 = vadd.f32 %v237, %v265
    %267 = vmatmul.f32.gmra.mxu0 %v215
    %v268 = vpop.f32.mrf.mxu0
    %v269 = vadd.f32 %v237, %v268
    %270 = vmatmul.f32.gmra.mxu0 %v216
    %v271 = vpop.f32.mrf.mxu0
    %v272 = vadd.f32 %v237, %v271
    %273 = vmatmul.f32.gmra.mxu0 %v217
    %v274 = vpop.f32.mrf.mxu0
    %v275 = vadd.f32 %v237, %v274
    %276 = vmatmul.f32.gmra.mxu0 %v218
    %v277 = vpop.f32.mrf.mxu0
    %v278 = vadd.f32 %v237, %v277
    %279 = vdwg.mxu0
    %vm280 = vcmask 31744
    %281 = vst.msk [vmem:[%s7] sm:$0xff] %vm280, %v257
    %282 = vst.msk [vmem:[%s7 + $0x8] sm:$0xff] %vm280, %v260
    %283 = vst.msk [vmem:[%s7 + $0x10] sm:$0xff] %vm280, %v263
    %284 = vst.msk [vmem:[%s7 + $0x18] sm:$0xff] %vm280, %v266
    %285 = vst.msk [vmem:[%s7 + $0x20] sm:$0xff] %vm280, %v269
    %286 = vst.msk [vmem:[%s7 + $0x28] sm:$0xff] %vm280, %v272
    %287 = vst.msk [vmem:[%s7 + $0x30] sm:$0xff] %vm280, %v275
    %288 = vst.msk [vmem:[%s7 + $0x38] sm:$0xff] %vm280, %v278
    // Predicated region
    $region38: #{qnet_forward.1} parent=1 // pred_check
      _
    $region39: #{qnet_forward.1} parent=1 // pred_check_branch
      %290 = sbr.rel (0) target = $region41
    $region40: #{qnet_forward.1} parent=1 // pred_region
      _
    $region41: #{qnet_forward.1} parent=1 // pred_fallthru
      _
    // Predicated region
    $region42: #{qnet_forward.1} parent=1 // pred_check
      _
    $region43: #{qnet_forward.1} parent=1 // pred_check_branch
      %292 = sbr.rel (0) target = $region45
    $region44: #{qnet_forward.1} parent=1 // pred_region
      _
    $region45: #{qnet_forward.1} parent=1 // pred_fallthru
      _
    %293 = vsyncpa [#allocation3], 1
    %294 = vsyncpa [#allocation5], 1

</llo_original>
